<compile_context>
chip_gen: v7x
topology: tpu7x:2x2x1
jax: 0.10.0
libtpu: 0.0.40
codegen_flags: <defaults>
</compile_context>

<pallas_src>
import functools

import jax
import jax.numpy as jnp
from jax.experimental import pallas as pl
from jax.experimental.pallas import tpu as pltpu


def _round_up(x, m):
    return ((x + m - 1) // m) * m


def ae_kernel(x_ref,
              w1_ref, b1_ref,
              w2_ref, b2_ref,
              w3_ref, b3_ref,
              w4_ref, b4_ref,
              w5_ref, b5_ref,
              xbar_ref, enc2_ref):
    # Compute dtype for the MXU is whatever the (pre-cast) weights are stored in
    # (bf16 on v6e/v7x path, f32 if use_bf16=False).  Accumulation is always f32.
    cdt = w1_ref.dtype

    h = x_ref[...].astype(cdt)

    # enc_1 + relu
    h = jnp.dot(h, w1_ref[...], preferred_element_type=jnp.float32) + b1_ref[...]
    h = jnp.maximum(h, 0.0)

    # enc_2 + relu (second returned value)
    h = jnp.dot(h.astype(cdt), w2_ref[...], preferred_element_type=jnp.float32) + b2_ref[...]
    h = jnp.maximum(h, 0.0)
    enc2_ref[...] = h.astype(enc2_ref.dtype)

    # dec_1 + relu
    h = jnp.dot(h.astype(cdt), w3_ref[...], preferred_element_type=jnp.float32) + b3_ref[...]
    h = jnp.maximum(h, 0.0)

    # dec_2 + relu
    h = jnp.dot(h.astype(cdt), w4_ref[...], preferred_element_type=jnp.float32) + b4_ref[...]
    h = jnp.maximum(h, 0.0)

    # x_bar_layer (no activation)
    h = jnp.dot(h.astype(cdt), w5_ref[...], preferred_element_type=jnp.float32) + b5_ref[...]
    xbar_ref[...] = h.astype(xbar_ref.dtype)


def ae_forward(x, params, *, tm=256, use_bf16=True):
    """params: list of 5 (W, b) with W shape (in, out), b shape (1, out).

    Returns (x_bar, enc_h2) matching the PyTorch AE.forward semantics.
    """
    B, n_input = x.shape
    # Layer widths: [n_input, n_enc_1, n_enc_2, n_dec_1, n_dec_2, n_input]
    dims = [n_input] + [w.shape[1] for (w, _) in params]
    assert dims[-1] == n_input, "x_bar_layer must map back to n_input"
    dims_p = [_round_up(d, 128) for d in dims]          # lane-dense feature dims
    n_enc_2 = dims[2]

    # Batch tile: biggest of (tm, padded batch); always a multiple of 8 sublanes.
    TM = min(tm, _round_up(B, 8))
    B_pad = _round_up(B, TM)
    grid = (pl.cdiv(B_pad, TM),)

    compute_dtype = jnp.bfloat16 if use_bf16 else jnp.float32
    itemsize = jnp.dtype(compute_dtype).itemsize

    # Zero-pad input (zero rows/cols never affect the real output rows/cols).
    x_p = jnp.zeros((B_pad, dims_p[0]), jnp.float32).at[:B, :n_input].set(
        x.astype(jnp.float32))

    flat_inputs = [x_p]
    in_specs = [pl.BlockSpec((TM, dims_p[0]), lambda i: (i, 0))]
    for li, (w, b) in enumerate(params):
        in_d, out_d = w.shape
        in_p, out_p = dims_p[li], dims_p[li + 1]
        w_p = jnp.zeros((in_p, out_p), compute_dtype).at[:in_d, :out_d].set(
            w.astype(compute_dtype))
        b_p = jnp.zeros((1, out_p), jnp.float32).at[:, :out_d].set(
            b.astype(jnp.float32))
        flat_inputs += [w_p, b_p]
        # Constant block index -> weights/biases stay resident in VMEM.
        in_specs.append(pl.BlockSpec((in_p, out_p), lambda i: (0, 0)))
        in_specs.append(pl.BlockSpec((1, out_p), lambda i: (0, 0)))

    out_specs = (
        pl.BlockSpec((TM, dims_p[5]), lambda i: (i, 0)),   # x_bar tile
        pl.BlockSpec((TM, dims_p[2]), lambda i: (i, 0)),   # enc_h2 tile
    )
    out_shape = (
        jax.ShapeDtypeStruct((B_pad, dims_p[5]), jnp.float32),
        jax.ShapeDtypeStruct((B_pad, dims_p[2]), jnp.float32),
    )

    # --- VMEM budget (sized against v7x's 64 MiB, generous headroom) ---------
    w_bytes = sum(dims_p[i] * dims_p[i + 1] for i in range(5)) * itemsize
    b_bytes = sum(dims_p[i + 1] for i in range(5)) * 4
    io_bytes = 2 * (TM * dims_p[0] * 4)                       # x tile, dbl-buffered
    io_bytes += 2 * (TM * dims_p[5] * 4 + TM * dims_p[2] * 4)  # output tiles
    act_bytes = 4 * TM * max(dims_p) * 4                       # live intermediates
    est = 2 * (w_bytes + b_bytes) + io_bytes + act_bytes
    vmem_limit = int(min(max(32 << 20, 2 * est), 64 << 20))

    # --- Cost hint for XLA scheduling around the custom call ------------------
    flops = 2 * B_pad * sum(dims_p[i] * dims_p[i + 1] for i in range(5))
    bytes_accessed = (x_p.size * 4 + w_bytes + b_bytes
                      + B_pad * (dims_p[5] + dims_p[2]) * 4)
    cost = pl.CostEstimate(flops=flops, transcendentals=0,
                           bytes_accessed=bytes_accessed)

    xbar_p, enc2_p = pl.pallas_call(
        ae_kernel,
        grid=grid,
        in_specs=in_specs,
        out_specs=out_specs,
        out_shape=out_shape,
        compiler_params=pltpu.CompilerParams(
            dimension_semantics=("parallel",),
            vmem_limit_bytes=vmem_limit,
        ),
        cost_estimate=cost,
    )(*flat_inputs)

    # Strip batch/feature padding.
    return xbar_p[:B, :n_input], enc2_p[:B, :n_enc_2]


def init_linear(key, n_in, n_out):
    """Matches torch.nn.Linear default init (U[-1/sqrt(in), 1/sqrt(in)]).
    Weight stored as (in, out) for the kernel's x @ W convention."""
    kw, kb = jax.random.split(key)
    bound = 1.0 / jnp.sqrt(jnp.float32(n_in))
    w = jax.random.uniform(kw, (n_in, n_out), jnp.float32, -bound, bound)
    b = jax.random.uniform(kb, (1, n_out), jnp.float32, -bound, bound)
    return w, b


def ae_reference(x, params, compute_dtype=jnp.float32):
    """Pure-JAX reference with the same dtype policy as the kernel."""
    h = x.astype(jnp.float32)
    enc_h2 = None
    for i, (w, b) in enumerate(params):
        h = jnp.dot(h.astype(compute_dtype), w.astype(compute_dtype),
                    preferred_element_type=jnp.float32) + b
        if i < 4:
            h = jnp.maximum(h, 0.0)
        if i == 1:
            enc_h2 = h
    return h, enc_h2


if __name__ == "__main__":
    # Small shapes consistent with the module (batch is intentionally not a
    # multiple of 8 to exercise the padding path).
    B = 70
    n_input = 48
    n_enc_1 = 128
    n_enc_2 = 32
    n_dec_1 = 128
    n_dec_2 = 64

    key = jax.random.PRNGKey(0)
    kx, k1, k2, k3, k4, k5 = jax.random.split(key, 6)

    x = jax.random.normal(kx, (B, n_input), jnp.float32)

    params = [
        init_linear(k1, n_input, n_enc_1),   # enc_1
        init_linear(k2, n_enc_1, n_enc_2),   # enc_2
        init_linear(k3, n_enc_2, n_dec_1),   # dec_1
        init_linear(k4, n_dec_1, n_dec_2),   # dec_2
        init_linear(k5, n_dec_2, n_input),   # x_bar_layer
    ]

    x_bar, enc_h2 = ae_forward(x, params, tm=256, use_bf16=True)
    jax.block_until_ready((x_bar, enc_h2))

    assert x_bar.shape == (B, n_input)
    assert enc_h2.shape == (B, n_enc_2)

    # Check against a reference using the same bf16-at-the-dot policy (tight).
    xb_bf, e2_bf = ae_reference(x, params, compute_dtype=jnp.bfloat16)
    assert jnp.allclose(x_bar, xb_bf, atol=1e-4, rtol=1e-4)
    assert jnp.allclose(enc_h2, e2_bf, atol=1e-4, rtol=1e-4)

    # Sanity check against the full-f32 reference (loose: bf16 MXU inputs).
    xb_f32, e2_f32 = ae_reference(x, params, compute_dtype=jnp.float32)
    assert jnp.allclose(x_bar, xb_f32, atol=5e-2, rtol=5e-2)
    assert jnp.allclose(enc_h2, e2_f32, atol=5e-2, rtol=5e-2)

    print("KERNEL_OK")
</pallas_src>

<mosaic_0001>
module attributes {stable_mosaic.version = 11 : i64} {
  func.func @ae_kernel(%arg0: i32, %arg1: memref<72x128xf32, #tpu.memory_space<vmem>>, %arg2: memref<128x128xbf16, #tpu.memory_space<vmem>>, %arg3: memref<1x128xf32, #tpu.memory_space<vmem>>, %arg4: memref<128x128xbf16, #tpu.memory_space<vmem>>, %arg5: memref<1x128xf32, #tpu.memory_space<vmem>>, %arg6: memref<128x128xbf16, #tpu.memory_space<vmem>>, %arg7: memref<1x128xf32, #tpu.memory_space<vmem>>, %arg8: memref<128x128xbf16, #tpu.memory_space<vmem>>, %arg9: memref<1x128xf32, #tpu.memory_space<vmem>>, %arg10: memref<128x128xbf16, #tpu.memory_space<vmem>>, %arg11: memref<1x128xf32, #tpu.memory_space<vmem>>, %arg12: memref<72x128xf32, #tpu.memory_space<vmem>>, %arg13: memref<72x128xf32, #tpu.memory_space<vmem>>) attributes {dimension_semantics = [#tpu.dimension_semantics<parallel>], iteration_bounds = array<i64: 1>, scalar_prefetch = 0 : i64, scratch_operands = 0 : i64, tpu.core_type = #tpu.core_type<tc>, window_params = [{transform_indices = @transform_0, window_bounds = array<i64: 72, 128>}, {pipeline_mode = #tpu.pipeline_mode<synchronous>, transform_indices = @transform_1, window_bounds = array<i64: 128, 128>}, {pipeline_mode = #tpu.pipeline_mode<synchronous>, transform_indices = @transform_2, window_bounds = array<i64: 1, 128>}, {pipeline_mode = #tpu.pipeline_mode<synchronous>, transform_indices = @transform_3, window_bounds = array<i64: 128, 128>}, {pipeline_mode = #tpu.pipeline_mode<synchronous>, transform_indices = @transform_4, window_bounds = array<i64: 1, 128>}, {pipeline_mode = #tpu.pipeline_mode<synchronous>, transform_indices = @transform_5, window_bounds = array<i64: 128, 128>}, {pipeline_mode = #tpu.pipeline_mode<synchronous>, transform_indices = @transform_6, window_bounds = array<i64: 1, 128>}, {pipeline_mode = #tpu.pipeline_mode<synchronous>, transform_indices = @transform_7, window_bounds = array<i64: 128, 128>}, {pipeline_mode = #tpu.pipeline_mode<synchronous>, transform_indices = @transform_8, window_bounds = array<i64: 1, 128>}, {pipeline_mode = #tpu.pipeline_mode<synchronous>, transform_indices = @transform_9, window_bounds = array<i64: 128, 128>}, {pipeline_mode = #tpu.pipeline_mode<synchronous>, transform_indices = @transform_10, window_bounds = array<i64: 1, 128>}, {transform_indices = @transform_11, window_bounds = array<i64: 72, 128>}, {transform_indices = @transform_12, window_bounds = array<i64: 72, 128>}]} {
    %c0 = arith.constant 0 : index
    %c0_0 = arith.constant 0 : index
    %0 = vector.load %arg1[%c0, %c0_0] : memref<72x128xf32, #tpu.memory_space<vmem>>, vector<72x128xf32>
    %1 = arith.truncf %0 : vector<72x128xf32> to vector<72x128xbf16>
    %c0_1 = arith.constant 0 : index
    %c0_2 = arith.constant 0 : index
    %2 = vector.load %arg2[%c0_1, %c0_2] : memref<128x128xbf16, #tpu.memory_space<vmem>>, vector<128x128xbf16>
    %cst = arith.constant dense<0.000000e+00> : vector<72x128xf32>
    %3 = tpu.matmul %1, %2, %cst {dimension_numbers = #tpu.dot_dimension_numbers<[1], [0], [0], [1], [0, 0, 1, 1], [], []>} : vector<72x128xbf16>, vector<128x128xbf16>, vector<72x128xf32> -> vector<72x128xf32>
    %c0_3 = arith.constant 0 : index
    %c0_4 = arith.constant 0 : index
    %4 = vector.load %arg3[%c0_3, %c0_4] : memref<1x128xf32, #tpu.memory_space<vmem>>, vector<1x128xf32>
    %5 = vector.broadcast %4 : vector<1x128xf32> to vector<72x128xf32>
    %6 = arith.addf %3, %5 : vector<72x128xf32>
    %cst_5 = arith.constant 0.000000e+00 : f32
    %7 = vector.broadcast %cst_5 : f32 to vector<72x128xf32>
    %8 = arith.maximumf %6, %7 : vector<72x128xf32>
    %9 = arith.truncf %8 : vector<72x128xf32> to vector<72x128xbf16>
    %c0_6 = arith.constant 0 : index
    %c0_7 = arith.constant 0 : index
    %10 = vector.load %arg4[%c0_6, %c0_7] : memref<128x128xbf16, #tpu.memory_space<vmem>>, vector<128x128xbf16>
    %cst_8 = arith.constant dense<0.000000e+00> : vector<72x128xf32>
    %11 = tpu.matmul %9, %10, %cst_8 {dimension_numbers = #tpu.dot_dimension_numbers<[1], [0], [0], [1], [0, 0, 1, 1], [], []>} : vector<72x128xbf16>, vector<128x128xbf16>, vector<72x128xf32> -> vector<72x128xf32>
    %c0_9 = arith.constant 0 : index
    %c0_10 = arith.constant 0 : index
    %12 = vector.load %arg5[%c0_9, %c0_10] : memref<1x128xf32, #tpu.memory_space<vmem>>, vector<1x128xf32>
    %13 = vector.broadcast %12 : vector<1x128xf32> to vector<72x128xf32>
    %14 = arith.addf %11, %13 : vector<72x128xf32>
    %cst_11 = arith.constant 0.000000e+00 : f32
    %15 = vector.broadcast %cst_11 : f32 to vector<72x128xf32>
    %16 = arith.maximumf %14, %15 : vector<72x128xf32>
    %c0_12 = arith.constant 0 : index
    %c0_13 = arith.constant 0 : index
    %17 = vector.load %arg13[%c0_12, %c0_13] : memref<72x128xf32, #tpu.memory_space<vmem>>, vector<72x128xf32>
    tpu.vector_store %arg13[%c0_12, %c0_13], %16 {strides = array<i32>} : memref<72x128xf32, #tpu.memory_space<vmem>>, vector<72x128xf32>,
    %18 = arith.truncf %16 : vector<72x128xf32> to vector<72x128xbf16>
    %c0_14 = arith.constant 0 : index
    %c0_15 = arith.constant 0 : index
    %19 = vector.load %arg6[%c0_14, %c0_15] : memref<128x128xbf16, #tpu.memory_space<vmem>>, vector<128x128xbf16>
    %cst_16 = arith.constant dense<0.000000e+00> : vector<72x128xf32>
    %20 = tpu.matmul %18, %19, %cst_16 {dimension_numbers = #tpu.dot_dimension_numbers<[1], [0], [0], [1], [0, 0, 1, 1], [], []>} : vector<72x128xbf16>, vector<128x128xbf16>, vector<72x128xf32> -> vector<72x128xf32>
    %c0_17 = arith.constant 0 : index
    %c0_18 = arith.constant 0 : index
    %21 = vector.load %arg7[%c0_17, %c0_18] : memref<1x128xf32, #tpu.memory_space<vmem>>, vector<1x128xf32>
    %22 = vector.broadcast %21 : vector<1x128xf32> to vector<72x128xf32>
    %23 = arith.addf %20, %22 : vector<72x128xf32>
    %cst_19 = arith.constant 0.000000e+00 : f32
    %24 = vector.broadcast %cst_19 : f32 to vector<72x128xf32>
    %25 = arith.maximumf %23, %24 : vector<72x128xf32>
    %26 = arith.truncf %25 : vector<72x128xf32> to vector<72x128xbf16>
    %c0_20 = arith.constant 0 : index
    %c0_21 = arith.constant 0 : index
    %27 = vector.load %arg8[%c0_20, %c0_21] : memref<128x128xbf16, #tpu.memory_space<vmem>>, vector<128x128xbf16>
    %cst_22 = arith.constant dense<0.000000e+00> : vector<72x128xf32>
    %28 = tpu.matmul %26, %27, %cst_22 {dimension_numbers = #tpu.dot_dimension_numbers<[1], [0], [0], [1], [0, 0, 1, 1], [], []>} : vector<72x128xbf16>, vector<128x128xbf16>, vector<72x128xf32> -> vector<72x128xf32>
    %c0_23 = arith.constant 0 : index
    %c0_24 = arith.constant 0 : index
    %29 = vector.load %arg9[%c0_23, %c0_24] : memref<1x128xf32, #tpu.memory_space<vmem>>, vector<1x128xf32>
    %30 = vector.broadcast %29 : vector<1x128xf32> to vector<72x128xf32>
    %31 = arith.addf %28, %30 : vector<72x128xf32>
    %cst_25 = arith.constant 0.000000e+00 : f32
    %32 = vector.broadcast %cst_25 : f32 to vector<72x128xf32>
    %33 = arith.maximumf %31, %32 : vector<72x128xf32>
    %34 = arith.truncf %33 : vector<72x128xf32> to vector<72x128xbf16>
    %c0_26 = arith.constant 0 : index
    %c0_27 = arith.constant 0 : index
    %35 = vector.load %arg10[%c0_26, %c0_27] : memref<128x128xbf16, #tpu.memory_space<vmem>>, vector<128x128xbf16>
    %cst_28 = arith.constant dense<0.000000e+00> : vector<72x128xf32>
    %36 = tpu.matmul %34, %35, %cst_28 {dimension_numbers = #tpu.dot_dimension_numbers<[1], [0], [0], [1], [0, 0, 1, 1], [], []>} : vector<72x128xbf16>, vector<128x128xbf16>, vector<72x128xf32> -> vector<72x128xf32>
    %c0_29 = arith.constant 0 : index
    %c0_30 = arith.constant 0 : index
    %37 = vector.load %arg11[%c0_29, %c0_30] : memref<1x128xf32, #tpu.memory_space<vmem>>, vector<1x128xf32>
    %38 = vector.broadcast %37 : vector<1x128xf32> to vector<72x128xf32>
    %39 = arith.addf %36, %38 : vector<72x128xf32>
    %c0_31 = arith.constant 0 : index
    %c0_32 = arith.constant 0 : index
    %40 = vector.load %arg12[%c0_31, %c0_32] : memref<72x128xf32, #tpu.memory_space<vmem>>, vector<72x128xf32>
    tpu.vector_store %arg12[%c0_31, %c0_32], %39 {strides = array<i32>} : memref<72x128xf32, #tpu.memory_space<vmem>>, vector<72x128xf32>,
    return
  }
  func.func @transform_0(%arg0: i32) -> (i32, i32) {
    %c0_i32 = arith.constant 0 : i32
    %c0_i32_0 = arith.constant 0 : i32
    return %arg0, %c0_i32 : i32, i32
  }
  func.func @transform_1(%arg0: i32) -> (i32, i32) {
    %c0_i32 = arith.constant 0 : i32
    %c0_i32_0 = arith.constant 0 : i32
    %c0_i32_1 = arith.constant 0 : i32
    return %c0_i32, %c0_i32_0 : i32, i32
  }
  func.func @transform_2(%arg0: i32) -> (i32, i32) {
    %c0_i32 = arith.constant 0 : i32
    %c0_i32_0 = arith.constant 0 : i32
    %c0_i32_1 = arith.constant 0 : i32
    return %c0_i32, %c0_i32_0 : i32, i32
  }
  func.func @transform_3(%arg0: i32) -> (i32, i32) {
    %c0_i32 = arith.constant 0 : i32
    %c0_i32_0 = arith.constant 0 : i32
    %c0_i32_1 = arith.constant 0 : i32
    return %c0_i32, %c0_i32_0 : i32, i32
  }
  func.func @transform_4(%arg0: i32) -> (i32, i32) {
    %c0_i32 = arith.constant 0 : i32
    %c0_i32_0 = arith.constant 0 : i32
    %c0_i32_1 = arith.constant 0 : i32
    return %c0_i32, %c0_i32_0 : i32, i32
  }
  func.func @transform_5(%arg0: i32) -> (i32, i32) {
    %c0_i32 = arith.constant 0 : i32
    %c0_i32_0 = arith.constant 0 : i32
    %c0_i32_1 = arith.constant 0 : i32
    return %c0_i32, %c0_i32_0 : i32, i32
  }
  func.func @transform_6(%arg0: i32) -> (i32, i32) {
    %c0_i32 = arith.constant 0 : i32
    %c0_i32_0 = arith.constant 0 : i32
    %c0_i32_1 = arith.constant 0 : i32
    return %c0_i32, %c0_i32_0 : i32, i32
  }
  func.func @transform_7(%arg0: i32) -> (i32, i32) {
    %c0_i32 = arith.constant 0 : i32
    %c0_i32_0 = arith.constant 0 : i32
    %c0_i32_1 = arith.constant 0 : i32
    return %c0_i32, %c0_i32_0 : i32, i32
  }
  func.func @transform_8(%arg0: i32) -> (i32, i32) {
    %c0_i32 = arith.constant 0 : i32
    %c0_i32_0 = arith.constant 0 : i32
    %c0_i32_1 = arith.constant 0 : i32
    return %c0_i32, %c0_i32_0 : i32, i32
  }
  func.func @transform_9(%arg0: i32) -> (i32, i32) {
    %c0_i32 = arith.constant 0 : i32
    %c0_i32_0 = arith.constant 0 : i32
    %c0_i32_1 = arith.constant 0 : i32
    return %c0_i32, %c0_i32_0 : i32, i32
  }
  func.func @transform_10(%arg0: i32) -> (i32, i32) {
    %c0_i32 = arith.constant 0 : i32
    %c0_i32_0 = arith.constant 0 : i32
    %c0_i32_1 = arith.constant 0 : i32
    return %c0_i32, %c0_i32_0 : i32, i32
  }
  func.func @transform_11(%arg0: i32) -> (i32, i32) {
    %c0_i32 = arith.constant 0 : i32
    %c0_i32_0 = arith.constant 0 : i32
    return %arg0, %c0_i32 : i32, i32
  }
  func.func @transform_12(%arg0: i32) -> (i32, i32) {
    %c0_i32 = arith.constant 0 : i32
    %c0_i32_0 = arith.constant 0 : i32
    return %arg0, %c0_i32 : i32, i32
  }
}

</mosaic_0001>

<llo_original>
// kernel: tpu_custom_call.1
$region0: #{tpu_custom_call.1}
  #allocation0 [shape = 'u32[]', space=smem, size = 0x4, offset = 0x4, fixed_abs, tag = 'smem constant byte address 0x4 - core index']
  #allocation1 [shape = 'u32[144,128]{1,0:T(1,128)}', space=vmem, size = 0x12000, scoped, tag = 'internal scratch']
  %s0 = inlined_call_operand.hbm [shape: f32[72,128], index: 0, kind: input, shape index: {}]
  %s1 = inlined_call_operand.hbm [shape: bf16[128,128], index: 1, kind: input, shape index: {}]
  %s2 = inlined_call_operand.vmem [shape: f32[1,128], index: 2, kind: input, shape index: {}]
  %s3 = inlined_call_operand.hbm [shape: bf16[128,128], index: 3, kind: input, shape index: {}]
  %s4 = inlined_call_operand.vmem [shape: f32[1,128], index: 4, kind: input, shape index: {}]
  %s5 = inlined_call_operand.hbm [shape: bf16[128,128], index: 5, kind: input, shape index: {}]
  %s6 = inlined_call_operand.vmem [shape: f32[1,128], index: 6, kind: input, shape index: {}]
  %s7 = inlined_call_operand.hbm [shape: bf16[128,128], index: 7, kind: input, shape index: {}]
  %s8 = inlined_call_operand.vmem [shape: f32[1,128], index: 8, kind: input, shape index: {}]
  %s9 = inlined_call_operand.hbm [shape: bf16[128,128], index: 9, kind: input, shape index: {}]
  %s10 = inlined_call_operand.vmem [shape: f32[1,128], index: 10, kind: input, shape index: {}]
  %s11 = inlined_call_operand.hbm [shape: f32[72,128], index: 11, kind: output, shape index: {0}]
  %s12 = inlined_call_operand.hbm [shape: f32[72,128], index: 12, kind: output, shape index: {1}]
  %13 = xla_tuple %s11, %s12
  %s14 = sld [smem:[#allocation0]]
  $region86: #{tpu_custom_call.1} parent=0
    _
  %s16 = ssub.s32 1, %s14
  %s17 = scalar_select 0, %s16, %s14
  $region1: #{tpu_custom_call.1} parent=0
    #allocation2 [shape = 'u8[36864]{0}', space=vmem, size = 0x9000, scoped, tag = 'input window, operand 0, single buffered']
    #allocation3 [shape = 's32[1]{0}', space=sflag, size = 0x4, scoped, tag = 'scoped memory for tpu_custom_call.1']
    #allocation4 [shape = 's32[1]{0}', space=sflag, size = 0x4, scoped, tag = 'scoped memory for tpu_custom_call.1']
    #allocation5 [shape = 'u8[32768]{0}', space=vmem, size = 0x8000, scoped, tag = 'input window, operand 1, single buffered']
    #allocation6 [shape = 's32[1]{0}', space=sflag, size = 0x4, scoped, tag = 'scoped memory for tpu_custom_call.1']
    #allocation7 [shape = 'u8[32768]{0}', space=vmem, size = 0x8000, scoped, tag = 'input window, operand 3, single buffered']
    #allocation8 [shape = 'u8[32768]{0}', space=vmem, size = 0x8000, scoped, tag = 'input window, operand 5, single buffered']
    #allocation9 [shape = 's32[1]{0}', space=sflag, size = 0x4, scoped, tag = 'scoped memory for tpu_custom_call.1']
    #allocation10 [shape = 'u8[32768]{0}', space=vmem, size = 0x8000, scoped, tag = 'input window, operand 7, single buffered']
    #allocation11 [shape = 'u8[32768]{0}', space=vmem, size = 0x8000, scoped, tag = 'input window, operand 9, single buffered']
    #allocation12 [shape = 's32[1]{0}', space=sflag, size = 0x4, scoped, tag = 'scoped memory for tpu_custom_call.1']
    #allocation13 [shape = 'u8[36864]{0}', space=vmem, size = 0x9000, scoped, tag = 'output window, operand 0, single buffered']
    #allocation14 [shape = 'u8[36864]{0}', space=vmem, size = 0x9000, scoped, tag = 'output window, operand 1, single buffered']
    #allocation15 [shape = 's32[1]{0}', space=sflag, size = 0x4, scoped, tag = 'scoped memory for tpu_custom_call.1']
    %18 = vsyncpa [#allocation3], 0
    %19 = vsyncpa [#allocation6], 0
    %20 = vsyncpa [#allocation9], 0
    %21 = vsyncpa [#allocation12], 0
    %22 = vsyncpa [#allocation4], 0
    %23 = vsyncpa [#allocation15], 0
    // Predicated region
    $region2: #{tpu_custom_call.1} parent=1 // pred_check
      _
    $region3: #{tpu_custom_call.1} parent=1 // pred_check_branch
      %25 = sbr.rel (0) target = $region5
    $region4: #{tpu_custom_call.1} parent=1 // pred_region
      %s27 = ssub.s32 1152, 1152
      %28 = vsyncadd [#allocation3], %s27
      %s29 = sshll.u32 [#allocation2], 4
      %s30 = int_to_ptr.vmem [resolvable:$true] %s29
      %35 = dma.hbm_to_vmem [thread:$0]  %s0, 1152, %s30, [#allocation3], 128, 128, 8
    $region5: #{tpu_custom_call.1} parent=1 // pred_fallthru
      _
    // Predicated region
    $region6: #{tpu_custom_call.1} parent=1 // pred_check
      _
    $region7: #{tpu_custom_call.1} parent=1 // pred_check_branch
      %37 = sbr.rel (0) target = $region9
    $region8: #{tpu_custom_call.1} parent=1 // pred_region
      %s39 = ssub.s32 1024, 1024
      %40 = vsyncadd [#allocation6], %s39
      %s41 = sshll.u32 [#allocation5], 4
      %s42 = int_to_ptr.vmem [resolvable:$true] %s41
      %47 = dma.hbm_to_vmem [thread:$0]  %s1, 1024, %s42, [#allocation6], 64, 64, 4
    $region9: #{tpu_custom_call.1} parent=1 // pred_fallthru
      _
    // Predicated region
    $region10: #{tpu_custom_call.1} parent=1 // pred_check
      _
    $region11: #{tpu_custom_call.1} parent=1 // pred_check_branch
      %49 = sbr.rel (0) target = $region13
    $region12: #{tpu_custom_call.1} parent=1 // pred_region
      _
    $region13: #{tpu_custom_call.1} parent=1 // pred_fallthru
      _
    // Predicated region
    $region14: #{tpu_custom_call.1} parent=1 // pred_check
      _
    $region15: #{tpu_custom_call.1} parent=1 // pred_check_branch
      %51 = sbr.rel (0) target = $region17
    $region16: #{tpu_custom_call.1} parent=1 // pred_region
      %s53 = ssub.s32 1024, 1024
      %54 = vsyncadd [#allocation6], %s53
      %s55 = sshll.u32 [#allocation7], 4
      %s56 = int_to_ptr.vmem [resolvable:$true] %s55
      %61 = dma.hbm_to_vmem [thread:$0]  %s3, 1024, %s56, [#allocation6], 64, 64, 4
    $region17: #{tpu_custom_call.1} parent=1 // pred_fallthru
      _
    // Predicated region
    $region18: #{tpu_custom_call.1} parent=1 // pred_check
      _
    $region19: #{tpu_custom_call.1} parent=1 // pred_check_branch
      %63 = sbr.rel (0) target = $region21
    $region20: #{tpu_custom_call.1} parent=1 // pred_region
      _
    $region21: #{tpu_custom_call.1} parent=1 // pred_fallthru
      _
    // Predicated region
    $region22: #{tpu_custom_call.1} parent=1 // pred_check
      _
    $region23: #{tpu_custom_call.1} parent=1 // pred_check_branch
      %65 = sbr.rel (0) target = $region25
    $region24: #{tpu_custom_call.1} parent=1 // pred_region
      %s67 = ssub.s32 1024, 1024
      %68 = vsyncadd [#allocation9], %s67
      %s69 = sshll.u32 [#allocation8], 4
      %s70 = int_to_ptr.vmem [resolvable:$true] %s69
      %75 = dma.hbm_to_vmem [thread:$0]  %s5, 1024, %s70, [#allocation9], 64, 64, 4
    $region25: #{tpu_custom_call.1} parent=1 // pred_fallthru
      _
    // Predicated region
    $region26: #{tpu_custom_call.1} parent=1 // pred_check
      _
    $region27: #{tpu_custom_call.1} parent=1 // pred_check_branch
      %77 = sbr.rel (0) target = $region29
    $region28: #{tpu_custom_call.1} parent=1 // pred_region
      _
    $region29: #{tpu_custom_call.1} parent=1 // pred_fallthru
      _
    // Predicated region
    $region30: #{tpu_custom_call.1} parent=1 // pred_check
      _
    $region31: #{tpu_custom_call.1} parent=1 // pred_check_branch
      %79 = sbr.rel (0) target = $region33
    $region32: #{tpu_custom_call.1} parent=1 // pred_region
      %s81 = ssub.s32 1024, 1024
      %82 = vsyncadd [#allocation9], %s81
      %s83 = sshll.u32 [#allocation10], 4
      %s84 = int_to_ptr.vmem [resolvable:$true] %s83
      %89 = dma.hbm_to_vmem [thread:$0]  %s7, 1024, %s84, [#allocation9], 64, 64, 4
    $region33: #{tpu_custom_call.1} parent=1 // pred_fallthru
      _
    // Predicated region
    $region34: #{tpu_custom_call.1} parent=1 // pred_check
      _
    $region35: #{tpu_custom_call.1} parent=1 // pred_check_branch
      %91 = sbr.rel (0) target = $region37
    $region36: #{tpu_custom_call.1} parent=1 // pred_region
      _
    $region37: #{tpu_custom_call.1} parent=1 // pred_fallthru
      _
    // Predicated region
    $region38: #{tpu_custom_call.1} parent=1 // pred_check
      _
    $region39: #{tpu_custom_call.1} parent=1 // pred_check_branch
      %93 = sbr.rel (0) target = $region41
    $region40: #{tpu_custom_call.1} parent=1 // pred_region
      %s95 = ssub.s32 1024, 1024
      %96 = vsyncadd [#allocation12], %s95
      %s97 = sshll.u32 [#allocation11], 4
      %s98 = int_to_ptr.vmem [resolvable:$true] %s97
      %103 = dma.hbm_to_vmem [thread:$0]  %s9, 1024, %s98, [#allocation12], 64, 64, 4
    $region41: #{tpu_custom_call.1} parent=1 // pred_fallthru
      _
    // Predicated region
    $region42: #{tpu_custom_call.1} parent=1 // pred_check
      _
    $region43: #{tpu_custom_call.1} parent=1 // pred_check_branch
      %105 = sbr.rel (0) target = $region45
    $region44: #{tpu_custom_call.1} parent=1 // pred_region
      _
    $region45: #{tpu_custom_call.1} parent=1 // pred_fallthru
      _
    // Predicated region
    $region46: #{tpu_custom_call.1} parent=1 // pred_check
      _
    $region47: #{tpu_custom_call.1} parent=1 // pred_check_branch
      %107 = sbr.rel (0) target = $region49
    $region48: #{tpu_custom_call.1} parent=1 // pred_region
      %108 = dma.done [#allocation3], 1152
    $region49: #{tpu_custom_call.1} parent=1 // pred_fallthru
      _
    // Predicated region
    $region50: #{tpu_custom_call.1} parent=1 // pred_check
      _
    $region51: #{tpu_custom_call.1} parent=1 // pred_check_branch
      %110 = sbr.rel (0) target = $region53
    $region52: #{tpu_custom_call.1} parent=1 // pred_region
      %111 = dma.done [#allocation6], 1024
    $region53: #{tpu_custom_call.1} parent=1 // pred_fallthru
      _
    // Predicated region
    $region54: #{tpu_custom_call.1} parent=1 // pred_check
      _
    $region55: #{tpu_custom_call.1} parent=1 // pred_check_branch
      %113 = sbr.rel (0) target = $region57
    $region56: #{tpu_custom_call.1} parent=1 // pred_region
      %114 = dma.done [#allocation6], 1024
    $region57: #{tpu_custom_call.1} parent=1 // pred_fallthru
      _
    // Predicated region
    $region58: #{tpu_custom_call.1} parent=1 // pred_check
      _
    $region59: #{tpu_custom_call.1} parent=1 // pred_check_branch
      %116 = sbr.rel (0) target = $region61
    $region60: #{tpu_custom_call.1} parent=1 // pred_region
      %117 = dma.done [#allocation9], 1024
    $region61: #{tpu_custom_call.1} parent=1 // pred_fallthru
      _
    // Predicated region
    $region62: #{tpu_custom_call.1} parent=1 // pred_check
      _
    $region63: #{tpu_custom_call.1} parent=1 // pred_check_branch
      %119 = sbr.rel (0) target = $region65
    $region64: #{tpu_custom_call.1} parent=1 // pred_region
      %120 = dma.done [#allocation9], 1024
    $region65: #{tpu_custom_call.1} parent=1 // pred_fallthru
      _
    // Predicated region
    $region66: #{tpu_custom_call.1} parent=1 // pred_check
      _
    $region67: #{tpu_custom_call.1} parent=1 // pred_check_branch
      %122 = sbr.rel (0) target = $region69
    $region68: #{tpu_custom_call.1} parent=1 // pred_region
      %123 = dma.done [#allocation12], 1024
    $region69: #{tpu_custom_call.1} parent=1 // pred_fallthru
      _
    %v125 = vld [vmem:[#allocation2] sm:$0xff]
    %v126 = vld [vmem:[#allocation2 + $0x8] sm:$0xff]
    %v127 = vld [vmem:[#allocation2 + $0x10] sm:$0xff]
    %v128 = vld [vmem:[#allocation2 + $0x18] sm:$0xff]
    %v129 = vld [vmem:[#allocation2 + $0x20] sm:$0xff]
    %v130 = vld [vmem:[#allocation2 + $0x28] sm:$0xff]
    %v131 = vld [vmem:[#allocation2 + $0x30] sm:$0xff]
    %v132 = vld [vmem:[#allocation2 + $0x38] sm:$0xff]
    %v133 = vld [vmem:[#allocation2 + $0x40] sm:$0xff]
    %v134 = vpack.c.bf16 %v126, %v125
    %v135 = vpack.c.bf16 %v128, %v127
    %v136 = vpack.c.bf16 %v130, %v129
    %v137 = vpack.c.bf16 %v132, %v131
    %v138 = vpack.c.bf16 %v133, %v133
    %v139 = vld [vmem:[#allocation5] sm:$0xf]
    %v140 = vld [vmem:[#allocation5 + $0x4] sm:$0xf]
    %v141 = vld [vmem:[#allocation5 + $0x8] sm:$0xf]
    %v142 = vld [vmem:[#allocation5 + $0xc] sm:$0xf]
    %v143 = vld [vmem:[#allocation5 + $0x10] sm:$0xf]
    %v144 = vld [vmem:[#allocation5 + $0x14] sm:$0xf]
    %v145 = vld [vmem:[#allocation5 + $0x18] sm:$0xf]
    %v146 = vld [vmem:[#allocation5 + $0x1c] sm:$0xf]
    %v147 = vld [vmem:[#allocation5 + $0x20] sm:$0xf]
    %v148 = vld [vmem:[#allocation5 + $0x24] sm:$0xf]
    %v149 = vld [vmem:[#allocation5 + $0x28] sm:$0xf]
    %v150 = vld [vmem:[#allocation5 + $0x2c] sm:$0xf]
    %v151 = vld [vmem:[#allocation5 + $0x30] sm:$0xf]
    %v152 = vld [vmem:[#allocation5 + $0x34] sm:$0xf]
    %v153 = vld [vmem:[#allocation5 + $0x38] sm:$0xf]
    %v154 = vld [vmem:[#allocation5 + $0x3c] sm:$0xf]
    %v155 = vld [vmem:[%s2] sm:$0x1]
    %v157 = vlaneseq
    %v158 = vshrl.u32 %v157, 7
    %v159 = vsub.s32 0, %v158
    %v160 = vrot.slane %v155, %v159
    %v178 = vunpack.c.l.b16 %v139
    %v179 = vunpack.c.l.b16 %v140
    %v180 = vunpack.c.l.b16 %v141
    %v181 = vunpack.c.l.b16 %v142
    %v182 = vunpack.c.l.b16 %v143
    %v183 = vunpack.c.l.b16 %v144
    %v184 = vunpack.c.l.b16 %v145
    %v185 = vunpack.c.l.b16 %v146
    %v186 = vunpack.c.l.b16 %v147
    %v187 = vunpack.c.l.b16 %v148
    %v188 = vunpack.c.l.b16 %v149
    %v189 = vunpack.c.l.b16 %v150
    %v190 = vunpack.c.l.b16 %v151
    %v191 = vunpack.c.l.b16 %v152
    %v192 = vunpack.c.l.b16 %v153
    %v193 = vunpack.c.l.b16 %v154
    %v194 = vpack.c.b16 %v179, %v178
    %v195 = vpack.c.b16 %v181, %v180
    %v196 = vpack.c.b16 %v183, %v182
    %v197 = vpack.c.b16 %v185, %v184
    %v198 = vpack.c.b16 %v187, %v186
    %v199 = vpack.c.b16 %v189, %v188
    %v200 = vpack.c.b16 %v191, %v190
    %v201 = vpack.c.b16 %v193, %v192
    %210 = vmatprep.subr.bf16.mxu0 0
    %211 = vmatpush1.bf16.msra.mxu0 %v194
    %212 = vmatprep.subr.bf16.mxu0 0
    %213 = vmatpush1.bf16.msra.mxu0 %v195
    %214 = vmatprep.subr.bf16.mxu0 0
    %215 = vmatpush1.bf16.msra.mxu0 %v196
    %216 = vmatprep.subr.bf16.mxu0 0
    %217 = vmatpush1.bf16.msra.mxu0 %v197
    %218 = vmatprep.subr.bf16.mxu0 0
    %219 = vmatpush1.bf16.msra.mxu0 %v198
    %220 = vmatprep.subr.bf16.mxu0 0
    %221 = vmatpush1.bf16.msra.mxu0 %v199
    %222 = vmatprep.subr.bf16.mxu0 0
    %223 = vmatpush1.bf16.msra.mxu0 %v200
    %224 = vmatprep.subr.bf16.mxu0 0
    %225 = vmatpush1.bf16.msra.mxu0 %v201
    %226 = vmatprep.subr.bf16.mxu0 0
    %227 = vmatpush1.bf16.msra.mxu0 0
    %228 = vmatprep.subr.bf16.mxu0 0
    %229 = vmatpush1.bf16.msra.mxu0 0
    %230 = vmatprep.subr.bf16.mxu0 0
    %231 = vmatpush1.bf16.msra.mxu0 0
    %232 = vmatprep.subr.bf16.mxu0 0
    %233 = vmatpush1.bf16.msra.mxu0 0
    %234 = vmatprep.subr.bf16.mxu0 0
    %235 = vmatpush1.bf16.msra.mxu0 0
    %236 = vmatprep.subr.bf16.mxu0 0
    %237 = vmatpush1.bf16.msra.mxu0 0
    %238 = vmatprep.subr.bf16.mxu0 0
    %239 = vmatpush1.bf16.msra.mxu0 0
    %240 = vmatprep.subr.bf16.mxu0 0
    %241 = vmatpush1.bf16.msra.mxu0 0
    %242 = vmatprep.mubr.bf16.mxu0 0
    %243 = vmatmul.mubr.bf16.gmra.mrb[0].mxu0 %v134
    %v244 = vpop.f32.mrb[0].mxu0
    %v245 = vadd.f32 %v160, %v244
    %v246 = vpop.f32.mrb[0].mxu0
    %v247 = vpop.f32.mrb[0].mxu0
    %v248 = vadd.f32 %v160, %v247
    %v249 = vpop.f32.mrb[0].mxu0
    %250 = vmatprep.mubr.bf16.mxu0 0
    %251 = vmatmul.mubr.bf16.gmra.mrb[0].mxu0 %v135
    %v252 = vpop.f32.mrb[0].mxu0
    %v253 = vadd.f32 %v160, %v252
    %v254 = vpop.f32.mrb[0].mxu0
    %v255 = vpop.f32.mrb[0].mxu0
    %v256 = vadd.f32 %v160, %v255
    %v257 = vpop.f32.mrb[0].mxu0
    %258 = vmatprep.mubr.bf16.mxu0 0
    %259 = vmatmul.mubr.bf16.gmra.mrb[0].mxu0 %v136
    %v260 = vpop.f32.mrb[0].mxu0
    %v261 = vadd.f32 %v160, %v260
    %v262 = vpop.f32.mrb[0].mxu0
    %v263 = vpop.f32.mrb[0].mxu0
    %v264 = vadd.f32 %v160, %v263
    %v265 = vpop.f32.mrb[0].mxu0
    %266 = vmatprep.mubr.bf16.mxu0 0
    %267 = vmatmul.mubr.bf16.gmra.mrb[0].mxu0 %v137
    %v268 = vpop.f32.mrb[0].mxu0
    %v269 = vadd.f32 %v160, %v268
    %v270 = vpop.f32.mrb[0].mxu0
    %v271 = vpop.f32.mrb[0].mxu0
    %v272 = vadd.f32 %v160, %v271
    %v273 = vpop.f32.mrb[0].mxu0
    %274 = vmatprep.mubr.bf16.mxu0 0
    %275 = vmatmul.mubr.bf16.gmra.mrb[0].mxu0 %v138
    %v276 = vpop.f32.mrb[0].mxu0
    %v277 = vadd.f32 %v160, %v276
    %v278 = vpop.f32.mrb[0].mxu0
    %v279 = vpop.f32.mrb[0].mxu0
    %v280 = vpop.f32.mrb[0].mxu0
    %281 = vdwg.mxu0
    %v282 = vmax.f32 %v245, 0.0
    %v283 = vmax.f32 %v248, 0.0
    %v284 = vmax.f32 %v253, 0.0
    %v285 = vmax.f32 %v256, 0.0
    %v286 = vmax.f32 %v261, 0.0
    %v287 = vmax.f32 %v264, 0.0
    %v288 = vmax.f32 %v269, 0.0
    %v289 = vmax.f32 %v272, 0.0
    %v290 = vmax.f32 %v277, 0.0
    %v291 = vpack.c.bf16 %v283, %v282
    %v292 = vpack.c.bf16 %v285, %v284
    %v293 = vpack.c.bf16 %v287, %v286
    %v294 = vpack.c.bf16 %v289, %v288
    %v295 = vpack.c.bf16 %v290, %v290
    %v296 = vld [vmem:[#allocation7] sm:$0xf]
    %v297 = vld [vmem:[#allocation7 + $0x4] sm:$0xf]
    %v298 = vld [vmem:[#allocation7 + $0x8] sm:$0xf]
    %v299 = vld [vmem:[#allocation7 + $0xc] sm:$0xf]
    %v300 = vld [vmem:[#allocation7 + $0x10] sm:$0xf]
    %v301 = vld [vmem:[#allocation7 + $0x14] sm:$0xf]
    %v302 = vld [vmem:[#allocation7 + $0x18] sm:$0xf]
    %v303 = vld [vmem:[#allocation7 + $0x1c] sm:$0xf]
    %v304 = vld [vmem:[#allocation7 + $0x20] sm:$0xf]
    %v305 = vld [vmem:[#allocation7 + $0x24] sm:$0xf]
    %v306 = vld [vmem:[#allocation7 + $0x28] sm:$0xf]
    %v307 = vld [vmem:[#allocation7 + $0x2c] sm:$0xf]
    %v308 = vld [vmem:[#allocation7 + $0x30] sm:$0xf]
    %v309 = vld [vmem:[#allocation7 + $0x34] sm:$0xf]
    %v310 = vld [vmem:[#allocation7 + $0x38] sm:$0xf]
    %v311 = vld [vmem:[#allocation7 + $0x3c] sm:$0xf]
    %v312 = vld [vmem:[%s4] sm:$0x1]
    %v314 = vlaneseq
    %v315 = vshrl.u32 %v314, 7
    %v316 = vsub.s32 0, %v315
    %v317 = vrot.slane %v312, %v316
    %v335 = vunpack.c.l.b16 %v296
    %v336 = vunpack.c.l.b16 %v297
    %v337 = vunpack.c.l.b16 %v298
    %v338 = vunpack.c.l.b16 %v299
    %v339 = vunpack.c.l.b16 %v300
    %v340 = vunpack.c.l.b16 %v301
    %v341 = vunpack.c.l.b16 %v302
    %v342 = vunpack.c.l.b16 %v303
    %v343 = vunpack.c.l.b16 %v304
    %v344 = vunpack.c.l.b16 %v305
    %v345 = vunpack.c.l.b16 %v306
    %v346 = vunpack.c.l.b16 %v307
    %v347 = vunpack.c.l.b16 %v308
    %v348 = vunpack.c.l.b16 %v309
    %v349 = vunpack.c.l.b16 %v310
    %v350 = vunpack.c.l.b16 %v311
    %v351 = vpack.c.b16 %v336, %v335
    %v352 = vpack.c.b16 %v338, %v337
    %v353 = vpack.c.b16 %v340, %v339
    %v354 = vpack.c.b16 %v342, %v341
    %v355 = vpack.c.b16 %v344, %v343
    %v356 = vpack.c.b16 %v346, %v345
    %v357 = vpack.c.b16 %v348, %v347
    %v358 = vpack.c.b16 %v350, %v349
    %367 = vmatprep.subr.bf16.mxu0 0
    %368 = vmatpush1.bf16.msra.mxu0 %v351
    %369 = vmatprep.subr.bf16.mxu0 0
    %370 = vmatpush1.bf16.msra.mxu0 %v352
    %371 = vmatprep.subr.bf16.mxu0 0
    %372 = vmatpush1.bf16.msra.mxu0 %v353
    %373 = vmatprep.subr.bf16.mxu0 0
    %374 = vmatpush1.bf16.msra.mxu0 %v354
    %375 = vmatprep.subr.bf16.mxu0 0
    %376 = vmatpush1.bf16.msra.mxu0 %v355
    %377 = vmatprep.subr.bf16.mxu0 0
    %378 = vmatpush1.bf16.msra.mxu0 %v356
    %379 = vmatprep.subr.bf16.mxu0 0
    %380 = vmatpush1.bf16.msra.mxu0 %v357
    %381 = vmatprep.subr.bf16.mxu0 0
    %382 = vmatpush1.bf16.msra.mxu0 %v358
    %383 = vmatprep.subr.bf16.mxu0 0
    %384 = vmatpush1.bf16.msra.mxu0 0
    %385 = vmatprep.subr.bf16.mxu0 0
    %386 = vmatpush1.bf16.msra.mxu0 0
    %387 = vmatprep.subr.bf16.mxu0 0
    %388 = vmatpush1.bf16.msra.mxu0 0
    %389 = vmatprep.subr.bf16.mxu0 0
    %390 = vmatpush1.bf16.msra.mxu0 0
    %391 = vmatprep.subr.bf16.mxu0 0
    %392 = vmatpush1.bf16.msra.mxu0 0
    %393 = vmatprep.subr.bf16.mxu0 0
    %394 = vmatpush1.bf16.msra.mxu0 0
    %395 = vmatprep.subr.bf16.mxu0 0
    %396 = vmatpush1.bf16.msra.mxu0 0
    %397 = vmatprep.subr.bf16.mxu0 0
    %398 = vmatpush1.bf16.msra.mxu0 0
    %399 = vmatprep.mubr.bf16.mxu0 0
    %400 = vmatmul.mubr.bf16.gmra.mrb[0].mxu0 %v291
    %v401 = vpop.f32.mrb[0].mxu0
    %v402 = vadd.f32 %v317, %v401
    %v403 = vpop.f32.mrb[0].mxu0
    %v404 = vpop.f32.mrb[0].mxu0
    %v405 = vadd.f32 %v317, %v404
    %v406 = vpop.f32.mrb[0].mxu0
    %407 = vmatprep.mubr.bf16.mxu0 0
    %408 = vmatmul.mubr.bf16.gmra.mrb[0].mxu0 %v292
    %v409 = vpop.f32.mrb[0].mxu0
    %v410 = vadd.f32 %v317, %v409
    %v411 = vpop.f32.mrb[0].mxu0
    %v412 = vpop.f32.mrb[0].mxu0
    %v413 = vadd.f32 %v317, %v412
    %v414 = vpop.f32.mrb[0].mxu0
    %415 = vmatprep.mubr.bf16.mxu0 0
    %416 = vmatmul.mubr.bf16.gmra.mrb[0].mxu0 %v293
    %v417 = vpop.f32.mrb[0].mxu0
    %v418 = vadd.f32 %v317, %v417
    %v419 = vpop.f32.mrb[0].mxu0
    %v420 = vpop.f32.mrb[0].mxu0
    %v421 = vadd.f32 %v317, %v420
    %v422 = vpop.f32.mrb[0].mxu0
    %423 = vmatprep.mubr.bf16.mxu0 0
    %424 = vmatmul.mubr.bf16.gmra.mrb[0].mxu0 %v294
    %v425 = vpop.f32.mrb[0].mxu0
    %v426 = vadd.f32 %v317, %v425
    %v427 = vpop.f32.mrb[0].mxu0
    %v428 = vpop.f32.mrb[0].mxu0
    %v429 = vadd.f32 %v317, %v428
    %v430 = vpop.f32.mrb[0].mxu0
    %431 = vmatprep.mubr.bf16.mxu0 0
    %432 = vmatmul.mubr.bf16.gmra.mrb[0].mxu0 %v295
    %v433 = vpop.f32.mrb[0].mxu0
    %v434 = vadd.f32 %v317, %v433
    %v435 = vpop.f32.mrb[0].mxu0
    %v436 = vpop.f32.mrb[0].mxu0
    %v437 = vpop.f32.mrb[0].mxu0
    %438 = vdwg.mxu0
    %v439 = vmax.f32 %v402, 0.0
    %v440 = vmax.f32 %v405, 0.0
    %v441 = vmax.f32 %v410, 0.0
    %v442 = vmax.f32 %v413, 0.0
    %v443 = vmax.f32 %v418, 0.0
    %v444 = vmax.f32 %v421, 0.0
    %v445 = vmax.f32 %v426, 0.0
    %v446 = vmax.f32 %v429, 0.0
    %v447 = vmax.f32 %v434, 0.0
    %448 = vst [vmem:[#allocation14] sm:$0xff] %v439
    %449 = vst [vmem:[#allocation14 + $0x8] sm:$0xff] %v440
    %450 = vst [vmem:[#allocation14 + $0x10] sm:$0xff] %v441
    %451 = vst [vmem:[#allocation14 + $0x18] sm:$0xff] %v442
    %452 = vst [vmem:[#allocation14 + $0x20] sm:$0xff] %v443
    %453 = vst [vmem:[#allocation14 + $0x28] sm:$0xff] %v444
    %454 = vst [vmem:[#allocation14 + $0x30] sm:$0xff] %v445
    %455 = vst [vmem:[#allocation14 + $0x38] sm:$0xff] %v446
    %456 = vst [vmem:[#allocation14 + $0x40] sm:$0xff] %v447
    %v457 = vpack.c.bf16 %v440, %v439
    %v458 = vpack.c.bf16 %v442, %v441
    %v459 = vpack.c.bf16 %v444, %v443
    %v460 = vpack.c.bf16 %v446, %v445
    %v461 = vpack.c.bf16 %v447, %v447
    %v462 = vld [vmem:[#allocation8] sm:$0xf]
    %v463 = vld [vmem:[#allocation8 + $0x4] sm:$0xf]
    %v464 = vld [vmem:[#allocation8 + $0x8] sm:$0xf]
    %v465 = vld [vmem:[#allocation8 + $0xc] sm:$0xf]
    %v466 = vld [vmem:[#allocation8 + $0x10] sm:$0xf]
    %v467 = vld [vmem:[#allocation8 + $0x14] sm:$0xf]
    %v468 = vld [vmem:[#allocation8 + $0x18] sm:$0xf]
    %v469 = vld [vmem:[#allocation8 + $0x1c] sm:$0xf]
    %v470 = vld [vmem:[#allocation8 + $0x20] sm:$0xf]
    %v471 = vld [vmem:[#allocation8 + $0x24] sm:$0xf]
    %v472 = vld [vmem:[#allocation8 + $0x28] sm:$0xf]
    %v473 = vld [vmem:[#allocation8 + $0x2c] sm:$0xf]
    %v474 = vld [vmem:[#allocation8 + $0x30] sm:$0xf]
    %v475 = vld [vmem:[#allocation8 + $0x34] sm:$0xf]
    %v476 = vld [vmem:[#allocation8 + $0x38] sm:$0xf]
    %v477 = vld [vmem:[#allocation8 + $0x3c] sm:$0xf]
    %v478 = vld [vmem:[%s6] sm:$0x1]
    %v480 = vlaneseq
    %v481 = vshrl.u32 %v480, 7
    %v482 = vsub.s32 0, %v481
    %v483 = vrot.slane %v478, %v482
    %v501 = vunpack.c.l.b16 %v462
    %v502 = vunpack.c.l.b16 %v463
    %v503 = vunpack.c.l.b16 %v464
    %v504 = vunpack.c.l.b16 %v465
    %v505 = vunpack.c.l.b16 %v466
    %v506 = vunpack.c.l.b16 %v467
    %v507 = vunpack.c.l.b16 %v468
    %v508 = vunpack.c.l.b16 %v469
    %v509 = vunpack.c.l.b16 %v470
    %v510 = vunpack.c.l.b16 %v471
    %v511 = vunpack.c.l.b16 %v472
    %v512 = vunpack.c.l.b16 %v473
    %v513 = vunpack.c.l.b16 %v474
    %v514 = vunpack.c.l.b16 %v475
    %v515 = vunpack.c.l.b16 %v476
    %v516 = vunpack.c.l.b16 %v477
    %v517 = vpack.c.b16 %v502, %v501
    %v518 = vpack.c.b16 %v504, %v503
    %v519 = vpack.c.b16 %v506, %v505
    %v520 = vpack.c.b16 %v508, %v507
    %v521 = vpack.c.b16 %v510, %v509
    %v522 = vpack.c.b16 %v512, %v511
    %v523 = vpack.c.b16 %v514, %v513
    %v524 = vpack.c.b16 %v516, %v515
    %533 = vmatprep.subr.bf16.mxu0 0
    %534 = vmatpush1.bf16.msra.mxu0 %v517
    %535 = vmatprep.subr.bf16.mxu0 0
    %536 = vmatpush1.bf16.msra.mxu0 %v518
    %537 = vmatprep.subr.bf16.mxu0 0
    %538 = vmatpush1.bf16.msra.mxu0 %v519
    %539 = vmatprep.subr.bf16.mxu0 0
    %540 = vmatpush1.bf16.msra.mxu0 %v520
    %541 = vmatprep.subr.bf16.mxu0 0
    %542 = vmatpush1.bf16.msra.mxu0 %v521
    %543 = vmatprep.subr.bf16.mxu0 0
    %544 = vmatpush1.bf16.msra.mxu0 %v522
    %545 = vmatprep.subr.bf16.mxu0 0
    %546 = vmatpush1.bf16.msra.mxu0 %v523
    %547 = vmatprep.subr.bf16.mxu0 0
    %548 = vmatpush1.bf16.msra.mxu0 %v524
    %549 = vmatprep.subr.bf16.mxu0 0
    %550 = vmatpush1.bf16.msra.mxu0 0
    %551 = vmatprep.subr.bf16.mxu0 0
    %552 = vmatpush1.bf16.msra.mxu0 0
    %553 = vmatprep.subr.bf16.mxu0 0
    %554 = vmatpush1.bf16.msra.mxu0 0
    %555 = vmatprep.subr.bf16.mxu0 0
    %556 = vmatpush1.bf16.msra.mxu0 0
    %557 = vmatprep.subr.bf16.mxu0 0
    %558 = vmatpush1.bf16.msra.mxu0 0
    %559 = vmatprep.subr.bf16.mxu0 0
    %560 = vmatpush1.bf16.msra.mxu0 0
    %561 = vmatprep.subr.bf16.mxu0 0
    %562 = vmatpush1.bf16.msra.mxu0 0
    %563 = vmatprep.subr.bf16.mxu0 0
    %564 = vmatpush1.bf16.msra.mxu0 0
    %565 = vmatprep.mubr.bf16.mxu0 0
    %566 = vmatmul.mubr.bf16.gmra.mrb[0].mxu0 %v457
    %v567 = vpop.f32.mrb[0].mxu0
    %v568 = vadd.f32 %v483, %v567
    %v569 = vpop.f32.mrb[0].mxu0
    %v570 = vpop.f32.mrb[0].mxu0
    %v571 = vadd.f32 %v483, %v570
    %v572 = vpop.f32.mrb[0].mxu0
    %573 = vmatprep.mubr.bf16.mxu0 0
    %574 = vmatmul.mubr.bf16.gmra.mrb[0].mxu0 %v458
    %v575 = vpop.f32.mrb[0].mxu0
    %v576 = vadd.f32 %v483, %v575
    %v577 = vpop.f32.mrb[0].mxu0
    %v578 = vpop.f32.mrb[0].mxu0
    %v579 = vadd.f32 %v483, %v578
    %v580 = vpop.f32.mrb[0].mxu0
    %581 = vmatprep.mubr.bf16.mxu0 0
    %582 = vmatmul.mubr.bf16.gmra.mrb[0].mxu0 %v459
    %v583 = vpop.f32.mrb[0].mxu0
    %v584 = vadd.f32 %v483, %v583
    %v585 = vpop.f32.mrb[0].mxu0
    %v586 = vpop.f32.mrb[0].mxu0
    %v587 = vadd.f32 %v483, %v586
    %v588 = vpop.f32.mrb[0].mxu0
    %589 = vmatprep.mubr.bf16.mxu0 0
    %590 = vmatmul.mubr.bf16.gmra.mrb[0].mxu0 %v460
    %v591 = vpop.f32.mrb[0].mxu0
    %v592 = vadd.f32 %v483, %v591
    %v593 = vpop.f32.mrb[0].mxu0
    %v594 = vpop.f32.mrb[0].mxu0
    %v595 = vadd.f32 %v483, %v594
    %v596 = vpop.f32.mrb[0].mxu0
    %597 = vmatprep.mubr.bf16.mxu0 0
    %598 = vmatmul.mubr.bf16.gmra.mrb[0].mxu0 %v461
    %v599 = vpop.f32.mrb[0].mxu0
    %v600 = vadd.f32 %v483, %v599
    %v601 = vpop.f32.mrb[0].mxu0
    %v602 = vpop.f32.mrb[0].mxu0
    %v603 = vpop.f32.mrb[0].mxu0
    %604 = vdwg.mxu0
    %v605 = vmax.f32 %v568, 0.0
    %v606 = vmax.f32 %v571, 0.0
    %v607 = vmax.f32 %v576, 0.0
    %v608 = vmax.f32 %v579, 0.0
    %v609 = vmax.f32 %v584, 0.0
    %v610 = vmax.f32 %v587, 0.0
    %v611 = vmax.f32 %v592, 0.0
    %v612 = vmax.f32 %v595, 0.0
    %v613 = vmax.f32 %v600, 0.0
    %v614 = vpack.c.bf16 %v606, %v605
    %v615 = vpack.c.bf16 %v608, %v607
    %v616 = vpack.c.bf16 %v610, %v609
    %v617 = vpack.c.bf16 %v612, %v611
    %v618 = vpack.c.bf16 %v613, %v613
    %v619 = vld [vmem:[#allocation10] sm:$0xf]
    %v620 = vld [vmem:[#allocation10 + $0x4] sm:$0xf]
    %v621 = vld [vmem:[#allocation10 + $0x8] sm:$0xf]
    %v622 = vld [vmem:[#allocation10 + $0xc] sm:$0xf]
    %v623 = vld [vmem:[#allocation10 + $0x10] sm:$0xf]
    %v624 = vld [vmem:[#allocation10 + $0x14] sm:$0xf]
    %v625 = vld [vmem:[#allocation10 + $0x18] sm:$0xf]
    %v626 = vld [vmem:[#allocation10 + $0x1c] sm:$0xf]
    %v627 = vld [vmem:[#allocation10 + $0x20] sm:$0xf]
    %v628 = vld [vmem:[#allocation10 + $0x24] sm:$0xf]
    %v629 = vld [vmem:[#allocation10 + $0x28] sm:$0xf]
    %v630 = vld [vmem:[#allocation10 + $0x2c] sm:$0xf]
    %v631 = vld [vmem:[#allocation10 + $0x30] sm:$0xf]
    %v632 = vld [vmem:[#allocation10 + $0x34] sm:$0xf]
    %v633 = vld [vmem:[#allocation10 + $0x38] sm:$0xf]
    %v634 = vld [vmem:[#allocation10 + $0x3c] sm:$0xf]
    %v635 = vld [vmem:[%s8] sm:$0x1]
    %v637 = vlaneseq
    %v638 = vshrl.u32 %v637, 7
    %v639 = vsub.s32 0, %v638
    %v640 = vrot.slane %v635, %v639
    %v658 = vunpack.c.l.b16 %v619
    %v659 = vunpack.c.l.b16 %v620
    %v660 = vunpack.c.l.b16 %v621
    %v661 = vunpack.c.l.b16 %v622
    %v662 = vunpack.c.l.b16 %v623
    %v663 = vunpack.c.l.b16 %v624
    %v664 = vunpack.c.l.b16 %v625
    %v665 = vunpack.c.l.b16 %v626
    %v666 = vunpack.c.l.b16 %v627
    %v667 = vunpack.c.l.b16 %v628
    %v668 = vunpack.c.l.b16 %v629
    %v669 = vunpack.c.l.b16 %v630
    %v670 = vunpack.c.l.b16 %v631
    %v671 = vunpack.c.l.b16 %v632
    %v672 = vunpack.c.l.b16 %v633
    %v673 = vunpack.c.l.b16 %v634
    %v674 = vpack.c.b16 %v659, %v658
    %v675 = vpack.c.b16 %v661, %v660
    %v676 = vpack.c.b16 %v663, %v662
    %v677 = vpack.c.b16 %v665, %v664
    %v678 = vpack.c.b16 %v667, %v666
    %v679 = vpack.c.b16 %v669, %v668
    %v680 = vpack.c.b16 %v671, %v670
    %v681 = vpack.c.b16 %v673, %v672
    %690 = vmatprep.subr.bf16.mxu0 0
    %691 = vmatpush1.bf16.msra.mxu0 %v674
    %692 = vmatprep.subr.bf16.mxu0 0
    %693 = vmatpush1.bf16.msra.mxu0 %v675
    %694 = vmatprep.subr.bf16.mxu0 0
    %695 = vmatpush1.bf16.msra.mxu0 %v676
    %696 = vmatprep.subr.bf16.mxu0 0
    %697 = vmatpush1.bf16.msra.mxu0 %v677
    %698 = vmatprep.subr.bf16.mxu0 0
    %699 = vmatpush1.bf16.msra.mxu0 %v678
    %700 = vmatprep.subr.bf16.mxu0 0
    %701 = vmatpush1.bf16.msra.mxu0 %v679
    %702 = vmatprep.subr.bf16.mxu0 0
    %703 = vmatpush1.bf16.msra.mxu0 %v680
    %704 = vmatprep.subr.bf16.mxu0 0
    %705 = vmatpush1.bf16.msra.mxu0 %v681
    %706 = vmatprep.subr.bf16.mxu0 0
    %707 = vmatpush1.bf16.msra.mxu0 0
    %708 = vmatprep.subr.bf16.mxu0 0
    %709 = vmatpush1.bf16.msra.mxu0 0
    %710 = vmatprep.subr.bf16.mxu0 0
    %711 = vmatpush1.bf16.msra.mxu0 0
    %712 = vmatprep.subr.bf16.mxu0 0
    %713 = vmatpush1.bf16.msra.mxu0 0
    %714 = vmatprep.subr.bf16.mxu0 0
    %715 = vmatpush1.bf16.msra.mxu0 0
    %716 = vmatprep.subr.bf16.mxu0 0
    %717 = vmatpush1.bf16.msra.mxu0 0
    %718 = vmatprep.subr.bf16.mxu0 0
    %719 = vmatpush1.bf16.msra.mxu0 0
    %720 = vmatprep.subr.bf16.mxu0 0
    %721 = vmatpush1.bf16.msra.mxu0 0
    %722 = vmatprep.mubr.bf16.mxu0 0
    %723 = vmatmul.mubr.bf16.gmra.mrb[0].mxu0 %v614
    %v724 = vpop.f32.mrb[0].mxu0
    %v725 = vadd.f32 %v640, %v724
    %v726 = vpop.f32.mrb[0].mxu0
    %v727 = vpop.f32.mrb[0].mxu0
    %v728 = vadd.f32 %v640, %v727
    %v729 = vpop.f32.mrb[0].mxu0
    %730 = vmatprep.mubr.bf16.mxu0 0
    %731 = vmatmul.mubr.bf16.gmra.mrb[0].mxu0 %v615
    %v732 = vpop.f32.mrb[0].mxu0
    %v733 = vadd.f32 %v640, %v732
    %v734 = vpop.f32.mrb[0].mxu0
    %v735 = vpop.f32.mrb[0].mxu0
    %v736 = vadd.f32 %v640, %v735
    %v737 = vpop.f32.mrb[0].mxu0
    %738 = vmatprep.mubr.bf16.mxu0 0
    %739 = vmatmul.mubr.bf16.gmra.mrb[0].mxu0 %v616
    %v740 = vpop.f32.mrb[0].mxu0
    %v741 = vadd.f32 %v640, %v740
    %v742 = vpop.f32.mrb[0].mxu0
    %v743 = vpop.f32.mrb[0].mxu0
    %v744 = vadd.f32 %v640, %v743
    %v745 = vpop.f32.mrb[0].mxu0
    %746 = vmatprep.mubr.bf16.mxu0 0
    %747 = vmatmul.mubr.bf16.gmra.mrb[0].mxu0 %v617
    %v748 = vpop.f32.mrb[0].mxu0
    %v749 = vadd.f32 %v640, %v748
    %v750 = vpop.f32.mrb[0].mxu0
    %v751 = vpop.f32.mrb[0].mxu0
    %v752 = vadd.f32 %v640, %v751
    %v753 = vpop.f32.mrb[0].mxu0
    %754 = vmatprep.mubr.bf16.mxu0 0
    %755 = vmatmul.mubr.bf16.gmra.mrb[0].mxu0 %v618
    %v756 = vpop.f32.mrb[0].mxu0
    %v757 = vadd.f32 %v640, %v756
    %v758 = vpop.f32.mrb[0].mxu0
    %v759 = vpop.f32.mrb[0].mxu0
    %v760 = vpop.f32.mrb[0].mxu0
    %761 = vdwg.mxu0
    %v762 = vmax.f32 %v725, 0.0
    %v763 = vmax.f32 %v728, 0.0
    %v764 = vmax.f32 %v733, 0.0
    %v765 = vmax.f32 %v736, 0.0
    %v766 = vmax.f32 %v741, 0.0
    %v767 = vmax.f32 %v744, 0.0
    %v768 = vmax.f32 %v749, 0.0
    %v769 = vmax.f32 %v752, 0.0
    %v770 = vmax.f32 %v757, 0.0
    %v771 = vpack.c.bf16 %v763, %v762
    %v772 = vpack.c.bf16 %v765, %v764
    %v773 = vpack.c.bf16 %v767, %v766
    %v774 = vpack.c.bf16 %v769, %v768
    %v775 = vpack.c.bf16 %v770, %v770
    %v776 = vld [vmem:[#allocation11] sm:$0xf]
    %v777 = vld [vmem:[#allocation11 + $0x4] sm:$0xf]
    %v778 = vld [vmem:[#allocation11 + $0x8] sm:$0xf]
    %v779 = vld [vmem:[#allocation11 + $0xc] sm:$0xf]
    %v780 = vld [vmem:[#allocation11 + $0x10] sm:$0xf]
    %v781 = vld [vmem:[#allocation11 + $0x14] sm:$0xf]
    %v782 = vld [vmem:[#allocation11 + $0x18] sm:$0xf]
    %v783 = vld [vmem:[#allocation11 + $0x1c] sm:$0xf]
    %v784 = vld [vmem:[#allocation11 + $0x20] sm:$0xf]
    %v785 = vld [vmem:[#allocation11 + $0x24] sm:$0xf]
    %v786 = vld [vmem:[#allocation11 + $0x28] sm:$0xf]
    %v787 = vld [vmem:[#allocation11 + $0x2c] sm:$0xf]
    %v788 = vld [vmem:[#allocation11 + $0x30] sm:$0xf]
    %v789 = vld [vmem:[#allocation11 + $0x34] sm:$0xf]
    %v790 = vld [vmem:[#allocation11 + $0x38] sm:$0xf]
    %v791 = vld [vmem:[#allocation11 + $0x3c] sm:$0xf]
    %v792 = vld [vmem:[%s10] sm:$0x1]
    %v794 = vlaneseq
    %v795 = vshrl.u32 %v794, 7
    %v796 = vsub.s32 0, %v795
    %v797 = vrot.slane %v792, %v796
    %v815 = vunpack.c.l.b16 %v776
    %v816 = vunpack.c.l.b16 %v777
    %v817 = vunpack.c.l.b16 %v778
    %v818 = vunpack.c.l.b16 %v779
    %v819 = vunpack.c.l.b16 %v780
    %v820 = vunpack.c.l.b16 %v781
    %v821 = vunpack.c.l.b16 %v782
    %v822 = vunpack.c.l.b16 %v783
    %v823 = vunpack.c.l.b16 %v784
    %v824 = vunpack.c.l.b16 %v785
    %v825 = vunpack.c.l.b16 %v786
    %v826 = vunpack.c.l.b16 %v787
    %v827 = vunpack.c.l.b16 %v788
    %v828 = vunpack.c.l.b16 %v789
    %v829 = vunpack.c.l.b16 %v790
    %v830 = vunpack.c.l.b16 %v791
    %v831 = vpack.c.b16 %v816, %v815
    %v832 = vpack.c.b16 %v818, %v817
    %v833 = vpack.c.b16 %v820, %v819
    %v834 = vpack.c.b16 %v822, %v821
    %v835 = vpack.c.b16 %v824, %v823
    %v836 = vpack.c.b16 %v826, %v825
    %v837 = vpack.c.b16 %v828, %v827
    %v838 = vpack.c.b16 %v830, %v829
    %847 = vmatprep.subr.bf16.mxu0 0
    %848 = vmatpush1.bf16.msra.mxu0 %v831
    %849 = vmatprep.subr.bf16.mxu0 0
    %850 = vmatpush1.bf16.msra.mxu0 %v832
    %851 = vmatprep.subr.bf16.mxu0 0
    %852 = vmatpush1.bf16.msra.mxu0 %v833
    %853 = vmatprep.subr.bf16.mxu0 0
    %854 = vmatpush1.bf16.msra.mxu0 %v834
    %855 = vmatprep.subr.bf16.mxu0 0
    %856 = vmatpush1.bf16.msra.mxu0 %v835
    %857 = vmatprep.subr.bf16.mxu0 0
    %858 = vmatpush1.bf16.msra.mxu0 %v836
    %859 = vmatprep.subr.bf16.mxu0 0
    %860 = vmatpush1.bf16.msra.mxu0 %v837
    %861 = vmatprep.subr.bf16.mxu0 0
    %862 = vmatpush1.bf16.msra.mxu0 %v838
    %863 = vmatprep.subr.bf16.mxu0 0
    %864 = vmatpush1.bf16.msra.mxu0 0
    %865 = vmatprep.subr.bf16.mxu0 0
    %866 = vmatpush1.bf16.msra.mxu0 0
    %867 = vmatprep.subr.bf16.mxu0 0
    %868 = vmatpush1.bf16.msra.mxu0 0
    %869 = vmatprep.subr.bf16.mxu0 0
    %870 = vmatpush1.bf16.msra.mxu0 0
    %871 = vmatprep.subr.bf16.mxu0 0
    %872 = vmatpush1.bf16.msra.mxu0 0
    %873 = vmatprep.subr.bf16.mxu0 0
    %874 = vmatpush1.bf16.msra.mxu0 0
    %875 = vmatprep.subr.bf16.mxu0 0
    %876 = vmatpush1.bf16.msra.mxu0 0
    %877 = vmatprep.subr.bf16.mxu0 0
    %878 = vmatpush1.bf16.msra.mxu0 0
    %879 = vmatprep.mubr.bf16.mxu0 0
    %880 = vmatmul.mubr.bf16.gmra.mrb[0].mxu0 %v771
    %v881 = vpop.f32.mrb[0].mxu0
    %v882 = vadd.f32 %v797, %v881
    %v883 = vpop.f32.mrb[0].mxu0
    %v884 = vpop.f32.mrb[0].mxu0
    %v885 = vadd.f32 %v797, %v884
    %v886 = vpop.f32.mrb[0].mxu0
    %887 = vmatprep.mubr.bf16.mxu0 0
    %888 = vmatmul.mubr.bf16.gmra.mrb[0].mxu0 %v772
    %v889 = vpop.f32.mrb[0].mxu0
    %v890 = vadd.f32 %v797, %v889
    %v891 = vpop.f32.mrb[0].mxu0
    %v892 = vpop.f32.mrb[0].mxu0
    %v893 = vadd.f32 %v797, %v892
    %v894 = vpop.f32.mrb[0].mxu0
    %895 = vmatprep.mubr.bf16.mxu0 0
    %896 = vmatmul.mubr.bf16.gmra.mrb[0].mxu0 %v773
    %v897 = vpop.f32.mrb[0].mxu0
    %v898 = vadd.f32 %v797, %v897
    %v899 = vpop.f32.mrb[0].mxu0
    %v900 = vpop.f32.mrb[0].mxu0
    %v901 = vadd.f32 %v797, %v900
    %v902 = vpop.f32.mrb[0].mxu0
    %903 = vmatprep.mubr.bf16.mxu0 0
    %904 = vmatmul.mubr.bf16.gmra.mrb[0].mxu0 %v774
    %v905 = vpop.f32.mrb[0].mxu0
    %v906 = vadd.f32 %v797, %v905
    %v907 = vpop.f32.mrb[0].mxu0
    %v908 = vpop.f32.mrb[0].mxu0
    %v909 = vadd.f32 %v797, %v908
    %v910 = vpop.f32.mrb[0].mxu0
    %911 = vmatprep.mubr.bf16.mxu0 0
    %912 = vmatmul.mubr.bf16.gmra.mrb[0].mxu0 %v775
    %v913 = vpop.f32.mrb[0].mxu0
    %v914 = vadd.f32 %v797, %v913
    %v915 = vpop.f32.mrb[0].mxu0
    %v916 = vpop.f32.mrb[0].mxu0
    %v917 = vpop.f32.mrb[0].mxu0
    %918 = vdwg.mxu0
    %919 = vst [vmem:[#allocation13] sm:$0xff] %v882
    %920 = vst [vmem:[#allocation13 + $0x8] sm:$0xff] %v885
    %921 = vst [vmem:[#allocation13 + $0x10] sm:$0xff] %v890
    %922 = vst [vmem:[#allocation13 + $0x18] sm:$0xff] %v893
    %923 = vst [vmem:[#allocation13 + $0x20] sm:$0xff] %v898
    %924 = vst [vmem:[#allocation13 + $0x28] sm:$0xff] %v901
    %925 = vst [vmem:[#allocation13 + $0x30] sm:$0xff] %v906
    %926 = vst [vmem:[#allocation13 + $0x38] sm:$0xff] %v909
    %927 = vst [vmem:[#allocation13 + $0x40] sm:$0xff] %v914
    // Predicated region
    $region70: #{tpu_custom_call.1} parent=1 // pred_check
      _
    $region71: #{tpu_custom_call.1} parent=1 // pred_check_branch
      %929 = sbr.rel (0) target = $region73
    $region72: #{tpu_custom_call.1} parent=1 // pred_region
      %s931 = ssub.s32 1152, 1152
      %932 = vsyncadd [#allocation4], %s931
      %s933 = sshll.u32 [#allocation13], 4
      %s934 = int_to_ptr.vmem [resolvable:$true] %s933
      %939 = dma.vmem_to_hbm [thread:$0]  %s934, 1152, %s11, [#allocation4], 128, 128, 8
    $region73: #{tpu_custom_call.1} parent=1 // pred_fallthru
      _
    // Predicated region
    $region74: #{tpu_custom_call.1} parent=1 // pred_check
      _
    $region75: #{tpu_custom_call.1} parent=1 // pred_check_branch
      %941 = sbr.rel (0) target = $region77
    $region76: #{tpu_custom_call.1} parent=1 // pred_region
      %s943 = ssub.s32 1152, 1152
      %944 = vsyncadd [#allocation15], %s943
      %s945 = sshll.u32 [#allocation14], 4
      %s946 = int_to_ptr.vmem [resolvable:$true] %s945
      %951 = dma.vmem_to_hbm [thread:$0]  %s946, 1152, %s12, [#allocation15], 128, 128, 8
    $region77: #{tpu_custom_call.1} parent=1 // pred_fallthru
      _
    // Predicated region
    $region78: #{tpu_custom_call.1} parent=1 // pred_check
      _
    $region79: #{tpu_custom_call.1} parent=1 // pred_check_branch
      %953 = sbr.rel (0) target = $region81
    $region80: #{tpu_custom_call.1} parent=1 // pred_region
      %954 = dma.done [#allocation4], 1152
    $region81: #{tpu_custom_call.1} parent=1 // pred_fallthru
      _
    // Predicated region
    $region82: #{tpu_custom_call.1} parent=1 // pred_check
      _
    $region83: #{tpu_custom_call.1} parent=1 // pred_check_branch
      %956 = sbr.rel (0) target = $region85
    $region84: #{tpu_custom_call.1} parent=1 // pred_region
      %957 = dma.done [#allocation15], 1152
    $region85: #{tpu_custom_call.1} parent=1 // pred_fallthru
      _
    %958 = vsyncpa [#allocation3], 1
    %959 = vsyncpa [#allocation6], 1
    %960 = vsyncpa [#allocation9], 1
    %961 = vsyncpa [#allocation12], 1
    %962 = vsyncpa [#allocation4], 1
    %963 = vsyncpa [#allocation15], 1

</llo_original>
